<compile_context>
chip_gen: v5e
topology: v5e:2x2
jax: 0.10.0
libtpu: 0.0.40
codegen_flags: <defaults>
</compile_context>

<pallas_src>
import math

import jax
import jax.numpy as jnp
from jax.experimental import pallas as pl
from jax.experimental.pallas import tpu as pltpu

INPUT_DIM = 1024
HIDDEN1 = 256
HIDDEN2 = 128
LATENT = 16
HEAD_OUT = 2 * LATENT  # fused mu|log_var head width (32)


def _encoder_kernel(x_ref, w1_ref, b1_ref, w2_ref, b2_ref, wh_ref, bh_ref, out_ref):
    # x arrives as f32 (single HBM pass); cast to bf16 on the VPU right before
    # feeding the MXU.  Accumulation / bias add / ReLU stay f32.
    x = x_ref[...].astype(jnp.bfloat16)

    h1 = jnp.dot(x, w1_ref[...],
                 preferred_element_type=jnp.float32) + b1_ref[...]
    h1 = jnp.maximum(h1, 0.0).astype(jnp.bfloat16)

    h2 = jnp.dot(h1, w2_ref[...],
                 preferred_element_type=jnp.float32) + b2_ref[...]
    h2 = jnp.maximum(h2, 0.0).astype(jnp.bfloat16)

    # Fused mu|log_var head: one (128,32) matmul, f32 output written directly.
    out_ref[...] = jnp.dot(h2, wh_ref[...],
                           preferred_element_type=jnp.float32) + bh_ref[...]


def init_params(key):
    """Torch nn.Linear default init: U(-1/sqrt(in), 1/sqrt(in)).
    Weights stored as (in, out) (transposed vs torch), biases as (1, out), f32."""
    def linear(key, fan_in, fan_out):
        kw, kb = jax.random.split(key)
        bound = 1.0 / math.sqrt(fan_in)
        w = jax.random.uniform(kw, (fan_in, fan_out), jnp.float32, -bound, bound)
        b = jax.random.uniform(kb, (1, fan_out), jnp.float32, -bound, bound)
        return w, b

    k1, k2, k3, k4 = jax.random.split(key, 4)
    w1, b1 = linear(k1, INPUT_DIM, HIDDEN1)
    w2, b2 = linear(k2, HIDDEN1, HIDDEN2)
    wmu, bmu = linear(k3, HIDDEN2, LATENT)
    wlv, blv = linear(k4, HIDDEN2, LATENT)
    return (w1, b1, w2, b2, wmu, bmu, wlv, blv)


def encoder_forward(x, params, *, tile_m=512):
    """Full EncoderNN.forward. `x` is any array whose element count is a multiple
    of 1024 (e.g. NCHW (2,4,16,16)). Returns (mu, log_var), each (B, 16) f32."""
    w1, b1, w2, b2, wmu, bmu, wlv, blv = params

    total = math.prod(x.shape)
    assert total % INPUT_DIM == 0, "input elements must be divisible by 1024"
    if x.ndim == 4:
        # AdaptiveAvgPool2d((16,16)) is only elided because the post-view maps are
        # exactly 16x16; guard the common NCHW case explicitly.
        assert x.shape[-2:] == (16, 16), "expected 16x16 spatial maps"
    B = total // INPUT_DIM

    # view(-1,1,16,16) + identity avgpool + reshape(-1,1024) == flat reshape.
    # Keep f32 here: the bf16 cast happens inside the kernel (no extra HBM pass).
    x2d = x.reshape(B, INPUT_DIM).astype(jnp.float32)

    # bf16 MXU operands for the weights (one-time small DMA), f32 biases.
    w1b = w1.astype(jnp.bfloat16)
    w2b = w2.astype(jnp.bfloat16)
    b1f = b1.astype(jnp.float32)
    b2f = b2.astype(jnp.float32)
    # Fused mu|log_var head: (128, 32) weight, (1, 32) bias.  No lane padding:
    # the 32-wide f32 output is 4x less HBM writeback than a 128-wide padded slab.
    whb = jnp.concatenate([wmu, wlv], axis=1).astype(jnp.bfloat16)   # (128, 32)
    bhf = jnp.concatenate([bmu, blv], axis=1).astype(jnp.float32)    # (1, 32)

    # Batch tiling: single-shot for small B; grid over B for large B with a
    # ragged (masked) trailing block -- no wrapper-side padding pass over HBM.
    if B > tile_m:
        tm = max(8, (tile_m // 8) * 8)   # sublane-aligned tile
    else:
        tm = B                            # block == full dim (legal for any B)
    grid = (pl.cdiv(B, tm),)

    def resident(arr):
        # Weight/bias blocks: constant index_map -> DMA'd once, VMEM-resident.
        n = arr.ndim
        return pl.BlockSpec(arr.shape, lambda i, n=n: (0,) * n)

    # v5e's scoped-VMEM default is only 16 MiB; raise it only if a large tile
    # actually needs it (the 512-row default stays well under the limit).
    est_vmem = (2 * tm * INPUT_DIM * 4            # double-buffered f32 x tile
                + 2 * tm * HEAD_OUT * 4           # double-buffered f32 out tile
                + tm * (HIDDEN1 + HIDDEN2) * 4    # h1/h2 f32 temporaries
                + 2 * 2 * (w1b.size + w2b.size + whb.size)  # bf16 weights (2 bufs)
                + (2 << 20))                      # slack
    cp_kwargs = dict(dimension_semantics=("parallel",))
    if est_vmem > 14 * 1024 * 1024:
        cp_kwargs["vmem_limit_bytes"] = int(min(est_vmem, 48 * 1024 * 1024))

    out = pl.pallas_call(
        _encoder_kernel,
        out_shape=jax.ShapeDtypeStruct((B, HEAD_OUT), jnp.float32),
        grid=grid,
        in_specs=[
            pl.BlockSpec((tm, INPUT_DIM), lambda i: (i, 0)),
            resident(w1b), resident(b1f),
            resident(w2b), resident(b2f),
            resident(whb), resident(bhf),
        ],
        out_specs=pl.BlockSpec((tm, HEAD_OUT), lambda i: (i, 0)),
        compiler_params=pltpu.CompilerParams(**cp_kwargs),
    )(x2d, w1b, b1f, w2b, b2f, whb, bhf)

    mu = out[:, :LATENT]
    log_var = out[:, LATENT:]
    return mu, log_var


def _reference_forward(x, params):
    """Pure-JAX reference with the SAME bf16 quantization of matmul operands."""
    w1, b1, w2, b2, wmu, bmu, wlv, blv = params
    total = math.prod(x.shape)
    B = total // INPUT_DIM
    f32 = lambda a: a.astype(jnp.bfloat16).astype(jnp.float32)
    hi = jax.lax.Precision.HIGHEST

    xb = f32(x.reshape(B, INPUT_DIM))
    h1 = jnp.maximum(jnp.dot(xb, f32(w1), precision=hi) + b1, 0.0)
    h1 = f32(h1)
    h2 = jnp.maximum(jnp.dot(h1, f32(w2), precision=hi) + b2, 0.0)
    h2 = f32(h2)
    mu = jnp.dot(h2, f32(wmu), precision=hi) + bmu
    lv = jnp.dot(h2, f32(wlv), precision=hi) + blv
    return mu, lv


if __name__ == "__main__":
    key = jax.random.PRNGKey(0)
    kx, kx2, kp = jax.random.split(key, 3)
    params = init_params(kp)

    # Small NCHW input: (2, 4, 16, 16) -> 2048 elements -> B = 2 rows of 1024.
    x = jax.random.normal(kx, (2, 4, 16, 16), jnp.float32)
    mu, log_var = encoder_forward(x, params)
    mu = jax.block_until_ready(mu)
    log_var = jax.block_until_ready(log_var)
    mu_ref, lv_ref = _reference_forward(x, params)
    assert mu.shape == (2, LATENT) and log_var.shape == (2, LATENT)
    assert jnp.allclose(mu, mu_ref, atol=5e-3, rtol=5e-3)
    assert jnp.allclose(log_var, lv_ref, atol=5e-3, rtol=5e-3)

    # Exercise the B-tiled path with a ragged trailing block (600 = 512 + 88),
    # i.e. grid over batch with NO wrapper-side padding.
    x_big = jax.random.normal(kx2, (600, 1024), jnp.float32)
    mu_b, lv_b = encoder_forward(x_big, params)
    mu_b = jax.block_until_ready(mu_b)
    lv_b = jax.block_until_ready(lv_b)
    mu_br, lv_br = _reference_forward(x_big, params)
    assert mu_b.shape == (600, LATENT) and lv_b.shape == (600, LATENT)
    assert jnp.allclose(mu_b, mu_br, atol=5e-3, rtol=5e-3)
    assert jnp.allclose(lv_b, lv_br, atol=5e-3, rtol=5e-3)

    print("KERNEL_OK")
</pallas_src>

<mosaic_0001>
module attributes {stable_mosaic.version = 11 : i64} {
  func.func @_encoder_kernel(%arg0: i32, %arg1: memref<2x1024xf32, #tpu.memory_space<vmem>>, %arg2: memref<1024x256xbf16, #tpu.memory_space<vmem>>, %arg3: memref<1x256xf32, #tpu.memory_space<vmem>>, %arg4: memref<256x128xbf16, #tpu.memory_space<vmem>>, %arg5: memref<1x128xf32, #tpu.memory_space<vmem>>, %arg6: memref<128x32xbf16, #tpu.memory_space<vmem>>, %arg7: memref<1x32xf32, #tpu.memory_space<vmem>>, %arg8: memref<2x32xf32, #tpu.memory_space<vmem>>) attributes {dimension_semantics = [#tpu.dimension_semantics<parallel>], iteration_bounds = array<i64: 1>, scalar_prefetch = 0 : i64, scratch_operands = 0 : i64, tpu.core_type = #tpu.core_type<tc>, window_params = [{transform_indices = @transform_0, window_bounds = array<i64: 2, 1024>}, {pipeline_mode = #tpu.pipeline_mode<synchronous>, transform_indices = @transform_1, window_bounds = array<i64: 1024, 256>}, {pipeline_mode = #tpu.pipeline_mode<synchronous>, transform_indices = @transform_2, window_bounds = array<i64: 1, 256>}, {pipeline_mode = #tpu.pipeline_mode<synchronous>, transform_indices = @transform_3, window_bounds = array<i64: 256, 128>}, {pipeline_mode = #tpu.pipeline_mode<synchronous>, transform_indices = @transform_4, window_bounds = array<i64: 1, 128>}, {pipeline_mode = #tpu.pipeline_mode<synchronous>, transform_indices = @transform_5, window_bounds = array<i64: 128, 32>}, {pipeline_mode = #tpu.pipeline_mode<synchronous>, transform_indices = @transform_6, window_bounds = array<i64: 1, 32>}, {transform_indices = @transform_7, window_bounds = array<i64: 2, 32>}]} {
    %c0 = arith.constant 0 : index
    %c0_0 = arith.constant 0 : index
    %0 = vector.load %arg1[%c0, %c0_0] : memref<2x1024xf32, #tpu.memory_space<vmem>>, vector<2x1024xf32>
    %1 = arith.truncf %0 : vector<2x1024xf32> to vector<2x1024xbf16>
    %c0_1 = arith.constant 0 : index
    %c0_2 = arith.constant 0 : index
    %2 = vector.load %arg2[%c0_1, %c0_2] : memref<1024x256xbf16, #tpu.memory_space<vmem>>, vector<1024x256xbf16>
    %cst = arith.constant dense<0.000000e+00> : vector<2x256xf32>
    %3 = tpu.matmul %1, %2, %cst {dimension_numbers = #tpu.dot_dimension_numbers<[1], [0], [0], [1], [0, 0, 1, 1], [], []>} : vector<2x1024xbf16>, vector<1024x256xbf16>, vector<2x256xf32> -> vector<2x256xf32>
    %c0_3 = arith.constant 0 : index
    %c0_4 = arith.constant 0 : index
    %4 = vector.load %arg3[%c0_3, %c0_4] : memref<1x256xf32, #tpu.memory_space<vmem>>, vector<1x256xf32>
    %5 = vector.broadcast %4 : vector<1x256xf32> to vector<2x256xf32>
    %6 = arith.addf %3, %5 : vector<2x256xf32>
    %cst_5 = arith.constant 0.000000e+00 : f32
    %7 = vector.broadcast %cst_5 : f32 to vector<2x256xf32>
    %8 = arith.maximumf %6, %7 : vector<2x256xf32>
    %9 = arith.truncf %8 : vector<2x256xf32> to vector<2x256xbf16>
    %c0_6 = arith.constant 0 : index
    %c0_7 = arith.constant 0 : index
    %10 = vector.load %arg4[%c0_6, %c0_7] : memref<256x128xbf16, #tpu.memory_space<vmem>>, vector<256x128xbf16>
    %cst_8 = arith.constant dense<0.000000e+00> : vector<2x128xf32>
    %11 = tpu.matmul %9, %10, %cst_8 {dimension_numbers = #tpu.dot_dimension_numbers<[1], [0], [0], [1], [0, 0, 1, 1], [], []>} : vector<2x256xbf16>, vector<256x128xbf16>, vector<2x128xf32> -> vector<2x128xf32>
    %c0_9 = arith.constant 0 : index
    %c0_10 = arith.constant 0 : index
    %12 = vector.load %arg5[%c0_9, %c0_10] : memref<1x128xf32, #tpu.memory_space<vmem>>, vector<1x128xf32>
    %13 = vector.broadcast %12 : vector<1x128xf32> to vector<2x128xf32>
    %14 = arith.addf %11, %13 : vector<2x128xf32>
    %cst_11 = arith.constant 0.000000e+00 : f32
    %15 = vector.broadcast %cst_11 : f32 to vector<2x128xf32>
    %16 = arith.maximumf %14, %15 : vector<2x128xf32>
    %17 = arith.truncf %16 : vector<2x128xf32> to vector<2x128xbf16>
    %c0_12 = arith.constant 0 : index
    %c0_13 = arith.constant 0 : index
    %18 = vector.load %arg6[%c0_12, %c0_13] : memref<128x32xbf16, #tpu.memory_space<vmem>>, vector<128x32xbf16>
    %cst_14 = arith.constant dense<0.000000e+00> : vector<2x32xf32>
    %19 = tpu.matmul %17, %18, %cst_14 {dimension_numbers = #tpu.dot_dimension_numbers<[1], [0], [0], [1], [0, 0, 1, 1], [], []>} : vector<2x128xbf16>, vector<128x32xbf16>, vector<2x32xf32> -> vector<2x32xf32>
    %c0_15 = arith.constant 0 : index
    %c0_16 = arith.constant 0 : index
    %20 = vector.load %arg7[%c0_15, %c0_16] : memref<1x32xf32, #tpu.memory_space<vmem>>, vector<1x32xf32>
    %21 = vector.broadcast %20 : vector<1x32xf32> to vector<2x32xf32>
    %22 = arith.addf %19, %21 : vector<2x32xf32>
    %c0_17 = arith.constant 0 : index
    %c0_18 = arith.constant 0 : index
    %23 = vector.load %arg8[%c0_17, %c0_18] : memref<2x32xf32, #tpu.memory_space<vmem>>, vector<2x32xf32>
    tpu.vector_store %arg8[%c0_17, %c0_18], %22 {strides = array<i32>} : memref<2x32xf32, #tpu.memory_space<vmem>>, vector<2x32xf32>,
    return
  }
  func.func @transform_0(%arg0: i32) -> (i32, i32) {
    %c0_i32 = arith.constant 0 : i32
    %c0_i32_0 = arith.constant 0 : i32
    return %arg0, %c0_i32 : i32, i32
  }
  func.func @transform_1(%arg0: i32) -> (i32, i32) {
    %c0_i32 = arith.constant 0 : i32
    %c0_i32_0 = arith.constant 0 : i32
    %c0_i32_1 = arith.constant 0 : i32
    return %c0_i32, %c0_i32_0 : i32, i32
  }
  func.func @transform_2(%arg0: i32) -> (i32, i32) {
    %c0_i32 = arith.constant 0 : i32
    %c0_i32_0 = arith.constant 0 : i32
    %c0_i32_1 = arith.constant 0 : i32
    return %c0_i32, %c0_i32_0 : i32, i32
  }
  func.func @transform_3(%arg0: i32) -> (i32, i32) {
    %c0_i32 = arith.constant 0 : i32
    %c0_i32_0 = arith.constant 0 : i32
    %c0_i32_1 = arith.constant 0 : i32
    return %c0_i32, %c0_i32_0 : i32, i32
  }
  func.func @transform_4(%arg0: i32) -> (i32, i32) {
    %c0_i32 = arith.constant 0 : i32
    %c0_i32_0 = arith.constant 0 : i32
    %c0_i32_1 = arith.constant 0 : i32
    return %c0_i32, %c0_i32_0 : i32, i32
  }
  func.func @transform_5(%arg0: i32) -> (i32, i32) {
    %c0_i32 = arith.constant 0 : i32
    %c0_i32_0 = arith.constant 0 : i32
    %c0_i32_1 = arith.constant 0 : i32
    return %c0_i32, %c0_i32_0 : i32, i32
  }
  func.func @transform_6(%arg0: i32) -> (i32, i32) {
    %c0_i32 = arith.constant 0 : i32
    %c0_i32_0 = arith.constant 0 : i32
    %c0_i32_1 = arith.constant 0 : i32
    return %c0_i32, %c0_i32_0 : i32, i32
  }
  func.func @transform_7(%arg0: i32) -> (i32, i32) {
    %c0_i32 = arith.constant 0 : i32
    %c0_i32_0 = arith.constant 0 : i32
    return %arg0, %c0_i32 : i32, i32
  }
}

</mosaic_0001>

<llo_original>
// kernel: tpu_custom_call.1
$region0: #{tpu_custom_call.1}
  #allocation0 [shape = 'u32[]', space=smem, size = 0x4, offset = 0x4, fixed_abs, tag = 'smem constant byte address 0x4 - core index']
  #allocation1 [shape = 'u32[72,128]{1,0:T(1,128)}', space=vmem, size = 0x9000, scoped, tag = 'internal scratch']
  %s0 = inlined_call_operand.vmem [shape: f32[2,1024], index: 0, kind: input, shape index: {}]
  %s1 = inlined_call_operand.hbm [shape: bf16[1024,256], index: 1, kind: input, shape index: {}]
  %s2 = inlined_call_operand.vmem [shape: f32[1,256], index: 2, kind: input, shape index: {}]
  %s3 = inlined_call_operand.hbm [shape: bf16[256,128], index: 3, kind: input, shape index: {}]
  %s4 = inlined_call_operand.vmem [shape: f32[1,128], index: 4, kind: input, shape index: {}]
  %s5 = inlined_call_operand.vmem [shape: bf16[128,32], index: 5, kind: input, shape index: {}]
  %s6 = inlined_call_operand.vmem [shape: f32[1,32], index: 6, kind: input, shape index: {}]
  %s7 = inlined_call_operand.hbm [shape: f32[2,32], index: 7, kind: output, shape index: {}]
  %s8 = sld [smem:[#allocation0]]
  $region46: #{tpu_custom_call.1} parent=0
    _
  %s10 = ssub.s32 1, %s8
  %s11 = scalar_select 0, %s10, %s8
  $region1: #{tpu_custom_call.1} parent=0
    #allocation2 [shape = 'u8[524288]{0}', space=vmem, size = 0x80000, scoped, tag = 'input window, operand 1, single buffered']
    #allocation3 [shape = 's32[1]{0}', space=sflag, size = 0x4, scoped, tag = 'scoped memory for tpu_custom_call.1']
    #allocation4 [shape = 's32[1]{0}', space=sflag, size = 0x4, scoped, tag = 'scoped memory for tpu_custom_call.1']
    #allocation5 [shape = 'u8[65536]{0}', space=vmem, size = 0x10000, scoped, tag = 'input window, operand 3, single buffered']
    #allocation6 [shape = 's32[1]{0}', space=sflag, size = 0x4, scoped, tag = 'scoped memory for tpu_custom_call.1']
    #allocation7 [shape = 'u8[1024]{0}', space=vmem, size = 0x400, scoped, tag = 'output window, operand 0, single buffered']
    %12 = vsyncpa [#allocation3], 0
    %13 = vsyncpa [#allocation6], 0
    %14 = vsyncpa [#allocation4], 0
    // Predicated region
    $region2: #{tpu_custom_call.1} parent=1 // pred_check
      _
    $region3: #{tpu_custom_call.1} parent=1 // pred_check_branch
      %16 = sbr.rel (0) target = $region5
    $region4: #{tpu_custom_call.1} parent=1 // pred_region
      _
    $region5: #{tpu_custom_call.1} parent=1 // pred_fallthru
      _
    // Predicated region
    $region6: #{tpu_custom_call.1} parent=1 // pred_check
      _
    $region7: #{tpu_custom_call.1} parent=1 // pred_check_branch
      %18 = sbr.rel (0) target = $region9
    $region8: #{tpu_custom_call.1} parent=1 // pred_region
      %20 = vsyncadd [#allocation3], 0
      %s21 = sshll.u32 %s1, 4
      %s22 = int_to_ptr.hbm [resolvable:$true] %s21
      %s23 = sshll.u32 [#allocation2], 4
      %s24 = int_to_ptr.vmem [resolvable:$true] %s23
      %29 = dma.hbm_to_vmem [thread:$0]  %s22, 16384, %s24, [#allocation3], 128, 128, 8
    $region9: #{tpu_custom_call.1} parent=1 // pred_fallthru
      _
    // Predicated region
    $region10: #{tpu_custom_call.1} parent=1 // pred_check
      _
    $region11: #{tpu_custom_call.1} parent=1 // pred_check_branch
      %31 = sbr.rel (0) target = $region13
    $region12: #{tpu_custom_call.1} parent=1 // pred_region
      _
    $region13: #{tpu_custom_call.1} parent=1 // pred_fallthru
      _
    // Predicated region
    $region14: #{tpu_custom_call.1} parent=1 // pred_check
      _
    $region15: #{tpu_custom_call.1} parent=1 // pred_check_branch
      %33 = sbr.rel (0) target = $region17
    $region16: #{tpu_custom_call.1} parent=1 // pred_region
      %35 = vsyncadd [#allocation6], 0
      %s36 = sshll.u32 %s3, 4
      %s37 = int_to_ptr.hbm [resolvable:$true] %s36
      %s38 = sshll.u32 [#allocation5], 4
      %s39 = int_to_ptr.vmem [resolvable:$true] %s38
      %44 = dma.hbm_to_vmem [thread:$0]  %s37, 2048, %s39, [#allocation6], 64, 64, 4
    $region17: #{tpu_custom_call.1} parent=1 // pred_fallthru
      _
    // Predicated region
    $region18: #{tpu_custom_call.1} parent=1 // pred_check
      _
    $region19: #{tpu_custom_call.1} parent=1 // pred_check_branch
      %46 = sbr.rel (0) target = $region21
    $region20: #{tpu_custom_call.1} parent=1 // pred_region
      _
    $region21: #{tpu_custom_call.1} parent=1 // pred_fallthru
      _
    // Predicated region
    $region22: #{tpu_custom_call.1} parent=1 // pred_check
      _
    $region23: #{tpu_custom_call.1} parent=1 // pred_check_branch
      %48 = sbr.rel (0) target = $region25
    $region24: #{tpu_custom_call.1} parent=1 // pred_region
      _
    $region25: #{tpu_custom_call.1} parent=1 // pred_fallthru
      _
    // Predicated region
    $region26: #{tpu_custom_call.1} parent=1 // pred_check
      _
    $region27: #{tpu_custom_call.1} parent=1 // pred_check_branch
      %50 = sbr.rel (0) target = $region29
    $region28: #{tpu_custom_call.1} parent=1 // pred_region
      _
    $region29: #{tpu_custom_call.1} parent=1 // pred_fallthru
      _
    // Predicated region
    $region30: #{tpu_custom_call.1} parent=1 // pred_check
      _
    $region31: #{tpu_custom_call.1} parent=1 // pred_check_branch
      %52 = sbr.rel (0) target = $region33
    $region32: #{tpu_custom_call.1} parent=1 // pred_region
      %54 = dma.done [#allocation3], 16384
    $region33: #{tpu_custom_call.1} parent=1 // pred_fallthru
      _
    // Predicated region
    $region34: #{tpu_custom_call.1} parent=1 // pred_check
      _
    $region35: #{tpu_custom_call.1} parent=1 // pred_check_branch
      %56 = sbr.rel (0) target = $region37
    $region36: #{tpu_custom_call.1} parent=1 // pred_region
      %58 = dma.done [#allocation6], 2048
    $region37: #{tpu_custom_call.1} parent=1 // pred_fallthru
      _
    %v59 = vld [vmem:[%s0] sm:$0xff]
    %v60 = vld [vmem:[%s0 + $0x8] sm:$0xff]
    %63 = vst [vmem:[#allocation1] ss:$4 sm:$0xff] %v59
    %s64 = scalar_lea.vmem [#allocation1], 32
    %65 = vst [vmem:[%s64] ss:$4 sm:$0xff] %v60
    %v66 = vld.sshfl [vmem:[#allocation1] sm:$0xff pattern:$0x73625140]
    %v67 = vld.sshfl [vmem:[#allocation1 + $0x8] sm:$0xff pattern:$0x73625140]
    %v68 = vld.sshfl [vmem:[#allocation1 + $0x10] sm:$0xff pattern:$0x73625140]
    %v69 = vld.sshfl [vmem:[#allocation1 + $0x18] sm:$0xff pattern:$0x73625140]
    %v70 = vld.sshfl [vmem:[#allocation1 + $0x20] sm:$0xff pattern:$0x73625140]
    %v71 = vld.sshfl [vmem:[#allocation1 + $0x28] sm:$0xff pattern:$0x73625140]
    %v72 = vld.sshfl [vmem:[#allocation1 + $0x30] sm:$0xff pattern:$0x73625140]
    %v73 = vld.sshfl [vmem:[#allocation1 + $0x38] sm:$0xff pattern:$0x73625140]
    %v82 = vpack.c.bf16 %v66, %v66
    %v83 = vpack.c.bf16 %v67, %v67
    %v84 = vpack.c.bf16 %v68, %v68
    %v85 = vpack.c.bf16 %v69, %v69
    %v86 = vpack.c.bf16 %v70, %v70
    %v87 = vpack.c.bf16 %v71, %v71
    %v88 = vpack.c.bf16 %v72, %v72
    %v89 = vpack.c.bf16 %v73, %v73
    %v90 = vld [vmem:[#allocation2] sm:$0xff]
    %v91 = vld [vmem:[#allocation2 + $0x8] sm:$0xff]
    %v92 = vld [vmem:[#allocation2 + $0x10] sm:$0xff]
    %v93 = vld [vmem:[#allocation2 + $0x18] sm:$0xff]
    %v94 = vld [vmem:[#allocation2 + $0x20] sm:$0xff]
    %v95 = vld [vmem:[#allocation2 + $0x28] sm:$0xff]
    %v96 = vld [vmem:[#allocation2 + $0x30] sm:$0xff]
    %v97 = vld [vmem:[#allocation2 + $0x38] sm:$0xff]
    %v98 = vld [vmem:[#allocation2 + $0x40] sm:$0xff]
    %v99 = vld [vmem:[#allocation2 + $0x48] sm:$0xff]
    %v100 = vld [vmem:[#allocation2 + $0x50] sm:$0xff]
    %v101 = vld [vmem:[#allocation2 + $0x58] sm:$0xff]
    %v102 = vld [vmem:[#allocation2 + $0x60] sm:$0xff]
    %v103 = vld [vmem:[#allocation2 + $0x68] sm:$0xff]
    %v104 = vld [vmem:[#allocation2 + $0x70] sm:$0xff]
    %v105 = vld [vmem:[#allocation2 + $0x78] sm:$0xff]
    %v106 = vld [vmem:[#allocation2 + $0x80] sm:$0xff]
    %v107 = vld [vmem:[#allocation2 + $0x88] sm:$0xff]
    %v108 = vld [vmem:[#allocation2 + $0x90] sm:$0xff]
    %v109 = vld [vmem:[#allocation2 + $0x98] sm:$0xff]
    %v110 = vld [vmem:[#allocation2 + $0xa0] sm:$0xff]
    %v111 = vld [vmem:[#allocation2 + $0xa8] sm:$0xff]
    %v112 = vld [vmem:[#allocation2 + $0xb0] sm:$0xff]
    %v113 = vld [vmem:[#allocation2 + $0xb8] sm:$0xff]
    %v114 = vld [vmem:[#allocation2 + $0xc0] sm:$0xff]
    %v115 = vld [vmem:[#allocation2 + $0xc8] sm:$0xff]
    %v116 = vld [vmem:[#allocation2 + $0xd0] sm:$0xff]
    %v117 = vld [vmem:[#allocation2 + $0xd8] sm:$0xff]
    %v118 = vld [vmem:[#allocation2 + $0xe0] sm:$0xff]
    %v119 = vld [vmem:[#allocation2 + $0xe8] sm:$0xff]
    %v120 = vld [vmem:[#allocation2 + $0xf0] sm:$0xff]
    %v121 = vld [vmem:[#allocation2 + $0xf8] sm:$0xff]
    %v122 = vld [vmem:[#allocation2 + $0x100] sm:$0xff]
    %v123 = vld [vmem:[#allocation2 + $0x108] sm:$0xff]
    %v124 = vld [vmem:[#allocation2 + $0x110] sm:$0xff]
    %v125 = vld [vmem:[#allocation2 + $0x118] sm:$0xff]
    %v126 = vld [vmem:[#allocation2 + $0x120] sm:$0xff]
    %v127 = vld [vmem:[#allocation2 + $0x128] sm:$0xff]
    %v128 = vld [vmem:[#allocation2 + $0x130] sm:$0xff]
    %v129 = vld [vmem:[#allocation2 + $0x138] sm:$0xff]
    %v130 = vld [vmem:[#allocation2 + $0x140] sm:$0xff]
    %v131 = vld [vmem:[#allocation2 + $0x148] sm:$0xff]
    %v132 = vld [vmem:[#allocation2 + $0x150] sm:$0xff]
    %v133 = vld [vmem:[#allocation2 + $0x158] sm:$0xff]
    %v134 = vld [vmem:[#allocation2 + $0x160] sm:$0xff]
    %v135 = vld [vmem:[#allocation2 + $0x168] sm:$0xff]
    %v136 = vld [vmem:[#allocation2 + $0x170] sm:$0xff]
    %v137 = vld [vmem:[#allocation2 + $0x178] sm:$0xff]
    %v138 = vld [vmem:[#allocation2 + $0x180] sm:$0xff]
    %v139 = vld [vmem:[#allocation2 + $0x188] sm:$0xff]
    %v140 = vld [vmem:[#allocation2 + $0x190] sm:$0xff]
    %v141 = vld [vmem:[#allocation2 + $0x198] sm:$0xff]
    %v142 = vld [vmem:[#allocation2 + $0x1a0] sm:$0xff]
    %v143 = vld [vmem:[#allocation2 + $0x1a8] sm:$0xff]
    %v144 = vld [vmem:[#allocation2 + $0x1b0] sm:$0xff]
    %v145 = vld [vmem:[#allocation2 + $0x1b8] sm:$0xff]
    %v146 = vld [vmem:[#allocation2 + $0x1c0] sm:$0xff]
    %v147 = vld [vmem:[#allocation2 + $0x1c8] sm:$0xff]
    %v148 = vld [vmem:[#allocation2 + $0x1d0] sm:$0xff]
    %v149 = vld [vmem:[#allocation2 + $0x1d8] sm:$0xff]
    %v150 = vld [vmem:[#allocation2 + $0x1e0] sm:$0xff]
    %v151 = vld [vmem:[#allocation2 + $0x1e8] sm:$0xff]
    %v152 = vld [vmem:[#allocation2 + $0x1f0] sm:$0xff]
    %v153 = vld [vmem:[#allocation2 + $0x1f8] sm:$0xff]
    %v154 = vld [vmem:[#allocation2 + $0x200] sm:$0xff]
    %v155 = vld [vmem:[#allocation2 + $0x208] sm:$0xff]
    %v156 = vld [vmem:[#allocation2 + $0x210] sm:$0xff]
    %v157 = vld [vmem:[#allocation2 + $0x218] sm:$0xff]
    %v158 = vld [vmem:[#allocation2 + $0x220] sm:$0xff]
    %v159 = vld [vmem:[#allocation2 + $0x228] sm:$0xff]
    %v160 = vld [vmem:[#allocation2 + $0x230] sm:$0xff]
    %v161 = vld [vmem:[#allocation2 + $0x238] sm:$0xff]
    %v162 = vld [vmem:[#allocation2 + $0x240] sm:$0xff]
    %v163 = vld [vmem:[#allocation2 + $0x248] sm:$0xff]
    %v164 = vld [vmem:[#allocation2 + $0x250] sm:$0xff]
    %v165 = vld [vmem:[#allocation2 + $0x258] sm:$0xff]
    %v166 = vld [vmem:[#allocation2 + $0x260] sm:$0xff]
    %v167 = vld [vmem:[#allocation2 + $0x268] sm:$0xff]
    %v168 = vld [vmem:[#allocation2 + $0x270] sm:$0xff]
    %v169 = vld [vmem:[#allocation2 + $0x278] sm:$0xff]
    %v170 = vld [vmem:[#allocation2 + $0x280] sm:$0xff]
    %v171 = vld [vmem:[#allocation2 + $0x288] sm:$0xff]
    %v172 = vld [vmem:[#allocation2 + $0x290] sm:$0xff]
    %v173 = vld [vmem:[#allocation2 + $0x298] sm:$0xff]
    %v174 = vld [vmem:[#allocation2 + $0x2a0] sm:$0xff]
    %v175 = vld [vmem:[#allocation2 + $0x2a8] sm:$0xff]
    %v176 = vld [vmem:[#allocation2 + $0x2b0] sm:$0xff]
    %v177 = vld [vmem:[#allocation2 + $0x2b8] sm:$0xff]
    %v178 = vld [vmem:[#allocation2 + $0x2c0] sm:$0xff]
    %v179 = vld [vmem:[#allocation2 + $0x2c8] sm:$0xff]
    %v180 = vld [vmem:[#allocation2 + $0x2d0] sm:$0xff]
    %v181 = vld [vmem:[#allocation2 + $0x2d8] sm:$0xff]
    %v182 = vld [vmem:[#allocation2 + $0x2e0] sm:$0xff]
    %v183 = vld [vmem:[#allocation2 + $0x2e8] sm:$0xff]
    %v184 = vld [vmem:[#allocation2 + $0x2f0] sm:$0xff]
    %v185 = vld [vmem:[#allocation2 + $0x2f8] sm:$0xff]
    %v186 = vld [vmem:[#allocation2 + $0x300] sm:$0xff]
    %v187 = vld [vmem:[#allocation2 + $0x308] sm:$0xff]
    %v188 = vld [vmem:[#allocation2 + $0x310] sm:$0xff]
    %v189 = vld [vmem:[#allocation2 + $0x318] sm:$0xff]
    %v190 = vld [vmem:[#allocation2 + $0x320] sm:$0xff]
    %v191 = vld [vmem:[#allocation2 + $0x328] sm:$0xff]
    %v192 = vld [vmem:[#allocation2 + $0x330] sm:$0xff]
    %v193 = vld [vmem:[#allocation2 + $0x338] sm:$0xff]
    %v194 = vld [vmem:[#allocation2 + $0x340] sm:$0xff]
    %v195 = vld [vmem:[#allocation2 + $0x348] sm:$0xff]
    %v196 = vld [vmem:[#allocation2 + $0x350] sm:$0xff]
    %v197 = vld [vmem:[#allocation2 + $0x358] sm:$0xff]
    %v198 = vld [vmem:[#allocation2 + $0x360] sm:$0xff]
    %v199 = vld [vmem:[#allocation2 + $0x368] sm:$0xff]
    %v200 = vld [vmem:[#allocation2 + $0x370] sm:$0xff]
    %v201 = vld [vmem:[#allocation2 + $0x378] sm:$0xff]
    %v202 = vld [vmem:[#allocation2 + $0x380] sm:$0xff]
    %v203 = vld [vmem:[#allocation2 + $0x388] sm:$0xff]
    %v204 = vld [vmem:[#allocation2 + $0x390] sm:$0xff]
    %v205 = vld [vmem:[#allocation2 + $0x398] sm:$0xff]
    %v206 = vld [vmem:[#allocation2 + $0x3a0] sm:$0xff]
    %v207 = vld [vmem:[#allocation2 + $0x3a8] sm:$0xff]
    %v208 = vld [vmem:[#allocation2 + $0x3b0] sm:$0xff]
    %v209 = vld [vmem:[#allocation2 + $0x3b8] sm:$0xff]
    %v210 = vld [vmem:[#allocation2 + $0x3c0] sm:$0xff]
    %v211 = vld [vmem:[#allocation2 + $0x3c8] sm:$0xff]
    %v212 = vld [vmem:[#allocation2 + $0x3d0] sm:$0xff]
    %v213 = vld [vmem:[#allocation2 + $0x3d8] sm:$0xff]
    %v214 = vld [vmem:[#allocation2 + $0x3e0] sm:$0xff]
    %v215 = vld [vmem:[#allocation2 + $0x3e8] sm:$0xff]
    %v216 = vld [vmem:[#allocation2 + $0x3f0] sm:$0xff]
    %v217 = vld [vmem:[#allocation2 + $0x3f8] sm:$0xff]
    %v218 = vld [vmem:[%s2] sm:$0x3]
    %v220 = vperm.slane %v218, 0
    %v221 = vperm.slane %v218, 1
    %v352 = vunpack.c.l.b16 %v90
    %v353 = vunpack.c.h.b16 %v90
    %v354 = vunpack.c.l.b16 %v91
    %v355 = vunpack.c.h.b16 %v91
    %v356 = vunpack.c.l.b16 %v92
    %v357 = vunpack.c.h.b16 %v92
    %v358 = vunpack.c.l.b16 %v93
    %v359 = vunpack.c.h.b16 %v93
    %v360 = vunpack.c.l.b16 %v94
    %v361 = vunpack.c.h.b16 %v94
    %v362 = vunpack.c.l.b16 %v95
    %v363 = vunpack.c.h.b16 %v95
    %v364 = vunpack.c.l.b16 %v96
    %v365 = vunpack.c.h.b16 %v96
    %v366 = vunpack.c.l.b16 %v97
    %v367 = vunpack.c.h.b16 %v97
    %v368 = vunpack.c.l.b16 %v98
    %v369 = vunpack.c.h.b16 %v98
    %v370 = vunpack.c.l.b16 %v99
    %v371 = vunpack.c.h.b16 %v99
    %v372 = vunpack.c.l.b16 %v100
    %v373 = vunpack.c.h.b16 %v100
    %v374 = vunpack.c.l.b16 %v101
    %v375 = vunpack.c.h.b16 %v101
    %v376 = vunpack.c.l.b16 %v102
    %v377 = vunpack.c.h.b16 %v102
    %v378 = vunpack.c.l.b16 %v103
    %v379 = vunpack.c.h.b16 %v103
    %v380 = vunpack.c.l.b16 %v104
    %v381 = vunpack.c.h.b16 %v104
    %v382 = vunpack.c.l.b16 %v105
    %v383 = vunpack.c.h.b16 %v105
    %v384 = vunpack.c.l.b16 %v106
    %v385 = vunpack.c.h.b16 %v106
    %v386 = vunpack.c.l.b16 %v107
    %v387 = vunpack.c.h.b16 %v107
    %v388 = vunpack.c.l.b16 %v108
    %v389 = vunpack.c.h.b16 %v108
    %v390 = vunpack.c.l.b16 %v109
    %v391 = vunpack.c.h.b16 %v109
    %v392 = vunpack.c.l.b16 %v110
    %v393 = vunpack.c.h.b16 %v110
    %v394 = vunpack.c.l.b16 %v111
    %v395 = vunpack.c.h.b16 %v111
    %v396 = vunpack.c.l.b16 %v112
    %v397 = vunpack.c.h.b16 %v112
    %v398 = vunpack.c.l.b16 %v113
    %v399 = vunpack.c.h.b16 %v113
    %v400 = vunpack.c.l.b16 %v114
    %v401 = vunpack.c.h.b16 %v114
    %v402 = vunpack.c.l.b16 %v115
    %v403 = vunpack.c.h.b16 %v115
    %v404 = vunpack.c.l.b16 %v116
    %v405 = vunpack.c.h.b16 %v116
    %v406 = vunpack.c.l.b16 %v117
    %v407 = vunpack.c.h.b16 %v117
    %v408 = vunpack.c.l.b16 %v118
    %v409 = vunpack.c.h.b16 %v118
    %v410 = vunpack.c.l.b16 %v119
    %v411 = vunpack.c.h.b16 %v119
    %v412 = vunpack.c.l.b16 %v120
    %v413 = vunpack.c.h.b16 %v120
    %v414 = vunpack.c.l.b16 %v121
    %v415 = vunpack.c.h.b16 %v121
    %v416 = vunpack.c.l.b16 %v122
    %v417 = vunpack.c.h.b16 %v122
    %v418 = vunpack.c.l.b16 %v123
    %v419 = vunpack.c.h.b16 %v123
    %v420 = vunpack.c.l.b16 %v124
    %v421 = vunpack.c.h.b16 %v124
    %v422 = vunpack.c.l.b16 %v125
    %v423 = vunpack.c.h.b16 %v125
    %v424 = vunpack.c.l.b16 %v126
    %v425 = vunpack.c.h.b16 %v126
    %v426 = vunpack.c.l.b16 %v127
    %v427 = vunpack.c.h.b16 %v127
    %v428 = vunpack.c.l.b16 %v128
    %v429 = vunpack.c.h.b16 %v128
    %v430 = vunpack.c.l.b16 %v129
    %v431 = vunpack.c.h.b16 %v129
    %v432 = vunpack.c.l.b16 %v130
    %v433 = vunpack.c.h.b16 %v130
    %v434 = vunpack.c.l.b16 %v131
    %v435 = vunpack.c.h.b16 %v131
    %v436 = vunpack.c.l.b16 %v132
    %v437 = vunpack.c.h.b16 %v132
    %v438 = vunpack.c.l.b16 %v133
    %v439 = vunpack.c.h.b16 %v133
    %v440 = vunpack.c.l.b16 %v134
    %v441 = vunpack.c.h.b16 %v134
    %v442 = vunpack.c.l.b16 %v135
    %v443 = vunpack.c.h.b16 %v135
    %v444 = vunpack.c.l.b16 %v136
    %v445 = vunpack.c.h.b16 %v136
    %v446 = vunpack.c.l.b16 %v137
    %v447 = vunpack.c.h.b16 %v137
    %v448 = vunpack.c.l.b16 %v138
    %v449 = vunpack.c.h.b16 %v138
    %v450 = vunpack.c.l.b16 %v139
    %v451 = vunpack.c.h.b16 %v139
    %v452 = vunpack.c.l.b16 %v140
    %v453 = vunpack.c.h.b16 %v140
    %v454 = vunpack.c.l.b16 %v141
    %v455 = vunpack.c.h.b16 %v141
    %v456 = vunpack.c.l.b16 %v142
    %v457 = vunpack.c.h.b16 %v142
    %v458 = vunpack.c.l.b16 %v143
    %v459 = vunpack.c.h.b16 %v143
    %v460 = vunpack.c.l.b16 %v144
    %v461 = vunpack.c.h.b16 %v144
    %v462 = vunpack.c.l.b16 %v145
    %v463 = vunpack.c.h.b16 %v145
    %v464 = vunpack.c.l.b16 %v146
    %v465 = vunpack.c.h.b16 %v146
    %v466 = vunpack.c.l.b16 %v147
    %v467 = vunpack.c.h.b16 %v147
    %v468 = vunpack.c.l.b16 %v148
    %v469 = vunpack.c.h.b16 %v148
    %v470 = vunpack.c.l.b16 %v149
    %v471 = vunpack.c.h.b16 %v149
    %v472 = vunpack.c.l.b16 %v150
    %v473 = vunpack.c.h.b16 %v150
    %v474 = vunpack.c.l.b16 %v151
    %v475 = vunpack.c.h.b16 %v151
    %v476 = vunpack.c.l.b16 %v152
    %v477 = vunpack.c.h.b16 %v152
    %v478 = vunpack.c.l.b16 %v153
    %v479 = vunpack.c.h.b16 %v153
    %v480 = vunpack.c.l.b16 %v154
    %v481 = vunpack.c.h.b16 %v154
    %v482 = vunpack.c.l.b16 %v155
    %v483 = vunpack.c.h.b16 %v155
    %v484 = vunpack.c.l.b16 %v156
    %v485 = vunpack.c.h.b16 %v156
    %v486 = vunpack.c.l.b16 %v157
    %v487 = vunpack.c.h.b16 %v157
    %v488 = vunpack.c.l.b16 %v158
    %v489 = vunpack.c.h.b16 %v158
    %v490 = vunpack.c.l.b16 %v159
    %v491 = vunpack.c.h.b16 %v159
    %v492 = vunpack.c.l.b16 %v160
    %v493 = vunpack.c.h.b16 %v160
    %v494 = vunpack.c.l.b16 %v161
    %v495 = vunpack.c.h.b16 %v161
    %v496 = vunpack.c.l.b16 %v162
    %v497 = vunpack.c.h.b16 %v162
    %v498 = vunpack.c.l.b16 %v163
    %v499 = vunpack.c.h.b16 %v163
    %v500 = vunpack.c.l.b16 %v164
    %v501 = vunpack.c.h.b16 %v164
    %v502 = vunpack.c.l.b16 %v165
    %v503 = vunpack.c.h.b16 %v165
    %v504 = vunpack.c.l.b16 %v166
    %v505 = vunpack.c.h.b16 %v166
    %v506 = vunpack.c.l.b16 %v167
    %v507 = vunpack.c.h.b16 %v167
    %v508 = vunpack.c.l.b16 %v168
    %v509 = vunpack.c.h.b16 %v168
    %v510 = vunpack.c.l.b16 %v169
    %v511 = vunpack.c.h.b16 %v169
    %v512 = vunpack.c.l.b16 %v170
    %v513 = vunpack.c.h.b16 %v170
    %v514 = vunpack.c.l.b16 %v171
    %v515 = vunpack.c.h.b16 %v171
    %v516 = vunpack.c.l.b16 %v172
    %v517 = vunpack.c.h.b16 %v172
    %v518 = vunpack.c.l.b16 %v173
    %v519 = vunpack.c.h.b16 %v173
    %v520 = vunpack.c.l.b16 %v174
    %v521 = vunpack.c.h.b16 %v174
    %v522 = vunpack.c.l.b16 %v175
    %v523 = vunpack.c.h.b16 %v175
    %v524 = vunpack.c.l.b16 %v176
    %v525 = vunpack.c.h.b16 %v176
    %v526 = vunpack.c.l.b16 %v177
    %v527 = vunpack.c.h.b16 %v177
    %v528 = vunpack.c.l.b16 %v178
    %v529 = vunpack.c.h.b16 %v178
    %v530 = vunpack.c.l.b16 %v179
    %v531 = vunpack.c.h.b16 %v179
    %v532 = vunpack.c.l.b16 %v180
    %v533 = vunpack.c.h.b16 %v180
    %v534 = vunpack.c.l.b16 %v181
    %v535 = vunpack.c.h.b16 %v181
    %v536 = vunpack.c.l.b16 %v182
    %v537 = vunpack.c.h.b16 %v182
    %v538 = vunpack.c.l.b16 %v183
    %v539 = vunpack.c.h.b16 %v183
    %v540 = vunpack.c.l.b16 %v184
    %v541 = vunpack.c.h.b16 %v184
    %v542 = vunpack.c.l.b16 %v185
    %v543 = vunpack.c.h.b16 %v185
    %v544 = vunpack.c.l.b16 %v186
    %v545 = vunpack.c.h.b16 %v186
    %v546 = vunpack.c.l.b16 %v187
    %v547 = vunpack.c.h.b16 %v187
    %v548 = vunpack.c.l.b16 %v188
    %v549 = vunpack.c.h.b16 %v188
    %v550 = vunpack.c.l.b16 %v189
    %v551 = vunpack.c.h.b16 %v189
    %v552 = vunpack.c.l.b16 %v190
    %v553 = vunpack.c.h.b16 %v190
    %v554 = vunpack.c.l.b16 %v191
    %v555 = vunpack.c.h.b16 %v191
    %v556 = vunpack.c.l.b16 %v192
    %v557 = vunpack.c.h.b16 %v192
    %v558 = vunpack.c.l.b16 %v193
    %v559 = vunpack.c.h.b16 %v193
    %v560 = vunpack.c.l.b16 %v194
    %v561 = vunpack.c.h.b16 %v194
    %v562 = vunpack.c.l.b16 %v195
    %v563 = vunpack.c.h.b16 %v195
    %v564 = vunpack.c.l.b16 %v196
    %v565 = vunpack.c.h.b16 %v196
    %v566 = vunpack.c.l.b16 %v197
    %v567 = vunpack.c.h.b16 %v197
    %v568 = vunpack.c.l.b16 %v198
    %v569 = vunpack.c.h.b16 %v198
    %v570 = vunpack.c.l.b16 %v199
    %v571 = vunpack.c.h.b16 %v199
    %v572 = vunpack.c.l.b16 %v200
    %v573 = vunpack.c.h.b16 %v200
    %v574 = vunpack.c.l.b16 %v201
    %v575 = vunpack.c.h.b16 %v201
    %v576 = vunpack.c.l.b16 %v202
    %v577 = vunpack.c.h.b16 %v202
    %v578 = vunpack.c.l.b16 %v203
    %v579 = vunpack.c.h.b16 %v203
    %v580 = vunpack.c.l.b16 %v204
    %v581 = vunpack.c.h.b16 %v204
    %v582 = vunpack.c.l.b16 %v205
    %v583 = vunpack.c.h.b16 %v205
    %v584 = vunpack.c.l.b16 %v206
    %v585 = vunpack.c.h.b16 %v206
    %v586 = vunpack.c.l.b16 %v207
    %v587 = vunpack.c.h.b16 %v207
    %v588 = vunpack.c.l.b16 %v208
    %v589 = vunpack.c.h.b16 %v208
    %v590 = vunpack.c.l.b16 %v209
    %v591 = vunpack.c.h.b16 %v209
    %v592 = vunpack.c.l.b16 %v210
    %v593 = vunpack.c.h.b16 %v210
    %v594 = vunpack.c.l.b16 %v211
    %v595 = vunpack.c.h.b16 %v211
    %v596 = vunpack.c.l.b16 %v212
    %v597 = vunpack.c.h.b16 %v212
    %v598 = vunpack.c.l.b16 %v213
    %v599 = vunpack.c.h.b16 %v213
    %v600 = vunpack.c.l.b16 %v214
    %v601 = vunpack.c.h.b16 %v214
    %v602 = vunpack.c.l.b16 %v215
    %v603 = vunpack.c.h.b16 %v215
    %v604 = vunpack.c.l.b16 %v216
    %v605 = vunpack.c.h.b16 %v216
    %v606 = vunpack.c.l.b16 %v217
    %v607 = vunpack.c.h.b16 %v217
    %v608 = vpack.c.b16 %v354, %v352
    %v609 = vpack.c.b16 %v355, %v353
    %v610 = vpack.c.b16 %v358, %v356
    %v611 = vpack.c.b16 %v359, %v357
    %v612 = vpack.c.b16 %v362, %v360
    %v613 = vpack.c.b16 %v363, %v361
    %v614 = vpack.c.b16 %v366, %v364
    %v615 = vpack.c.b16 %v367, %v365
    %v616 = vpack.c.b16 %v370, %v368
    %v617 = vpack.c.b16 %v371, %v369
    %v618 = vpack.c.b16 %v374, %v372
    %v619 = vpack.c.b16 %v375, %v373
    %v620 = vpack.c.b16 %v378, %v376
    %v621 = vpack.c.b16 %v379, %v377
    %v622 = vpack.c.b16 %v382, %v380
    %v623 = vpack.c.b16 %v383, %v381
    %v624 = vpack.c.b16 %v386, %v384
    %v625 = vpack.c.b16 %v387, %v385
    %v626 = vpack.c.b16 %v390, %v388
    %v627 = vpack.c.b16 %v391, %v389
    %v628 = vpack.c.b16 %v394, %v392
    %v629 = vpack.c.b16 %v395, %v393
    %v630 = vpack.c.b16 %v398, %v396
    %v631 = vpack.c.b16 %v399, %v397
    %v632 = vpack.c.b16 %v402, %v400
    %v633 = vpack.c.b16 %v403, %v401
    %v634 = vpack.c.b16 %v406, %v404
    %v635 = vpack.c.b16 %v407, %v405
    %v636 = vpack.c.b16 %v410, %v408
    %v637 = vpack.c.b16 %v411, %v409
    %v638 = vpack.c.b16 %v414, %v412
    %v639 = vpack.c.b16 %v415, %v413
    %v640 = vpack.c.b16 %v418, %v416
    %v641 = vpack.c.b16 %v419, %v417
    %v642 = vpack.c.b16 %v422, %v420
    %v643 = vpack.c.b16 %v423, %v421
    %v644 = vpack.c.b16 %v426, %v424
    %v645 = vpack.c.b16 %v427, %v425
    %v646 = vpack.c.b16 %v430, %v428
    %v647 = vpack.c.b16 %v431, %v429
    %v648 = vpack.c.b16 %v434, %v432
    %v649 = vpack.c.b16 %v435, %v433
    %v650 = vpack.c.b16 %v438, %v436
    %v651 = vpack.c.b16 %v439, %v437
    %v652 = vpack.c.b16 %v442, %v440
    %v653 = vpack.c.b16 %v443, %v441
    %v654 = vpack.c.b16 %v446, %v444
    %v655 = vpack.c.b16 %v447, %v445
    %v656 = vpack.c.b16 %v450, %v448
    %v657 = vpack.c.b16 %v451, %v449
    %v658 = vpack.c.b16 %v454, %v452
    %v659 = vpack.c.b16 %v455, %v453
    %v660 = vpack.c.b16 %v458, %v456
    %v661 = vpack.c.b16 %v459, %v457
    %v662 = vpack.c.b16 %v462, %v460
    %v663 = vpack.c.b16 %v463, %v461
    %v664 = vpack.c.b16 %v466, %v464
    %v665 = vpack.c.b16 %v467, %v465
    %v666 = vpack.c.b16 %v470, %v468
    %v667 = vpack.c.b16 %v471, %v469
    %v668 = vpack.c.b16 %v474, %v472
    %v669 = vpack.c.b16 %v475, %v473
    %v670 = vpack.c.b16 %v478, %v476
    %v671 = vpack.c.b16 %v479, %v477
    %v672 = vpack.c.b16 %v482, %v480
    %v673 = vpack.c.b16 %v483, %v481
    %v674 = vpack.c.b16 %v486, %v484
    %v675 = vpack.c.b16 %v487, %v485
    %v676 = vpack.c.b16 %v490, %v488
    %v677 = vpack.c.b16 %v491, %v489
    %v678 = vpack.c.b16 %v494, %v492
    %v679 = vpack.c.b16 %v495, %v493
    %v680 = vpack.c.b16 %v498, %v496
    %v681 = vpack.c.b16 %v499, %v497
    %v682 = vpack.c.b16 %v502, %v500
    %v683 = vpack.c.b16 %v503, %v501
    %v684 = vpack.c.b16 %v506, %v504
    %v685 = vpack.c.b16 %v507, %v505
    %v686 = vpack.c.b16 %v510, %v508
    %v687 = vpack.c.b16 %v511, %v509
    %v688 = vpack.c.b16 %v514, %v512
    %v689 = vpack.c.b16 %v515, %v513
    %v690 = vpack.c.b16 %v518, %v516
    %v691 = vpack.c.b16 %v519, %v517
    %v692 = vpack.c.b16 %v522, %v520
    %v693 = vpack.c.b16 %v523, %v521
    %v694 = vpack.c.b16 %v526, %v524
    %v695 = vpack.c.b16 %v527, %v525
    %v696 = vpack.c.b16 %v530, %v528
    %v697 = vpack.c.b16 %v531, %v529
    %v698 = vpack.c.b16 %v534, %v532
    %v699 = vpack.c.b16 %v535, %v533
    %v700 = vpack.c.b16 %v538, %v536
    %v701 = vpack.c.b16 %v539, %v537
    %v702 = vpack.c.b16 %v542, %v540
    %v703 = vpack.c.b16 %v543, %v541
    %v704 = vpack.c.b16 %v546, %v544
    %v705 = vpack.c.b16 %v547, %v545
    %v706 = vpack.c.b16 %v550, %v548
    %v707 = vpack.c.b16 %v551, %v549
    %v708 = vpack.c.b16 %v554, %v552
    %v709 = vpack.c.b16 %v555, %v553
    %v710 = vpack.c.b16 %v558, %v556
    %v711 = vpack.c.b16 %v559, %v557
    %v712 = vpack.c.b16 %v562, %v560
    %v713 = vpack.c.b16 %v563, %v561
    %v714 = vpack.c.b16 %v566, %v564
    %v715 = vpack.c.b16 %v567, %v565
    %v716 = vpack.c.b16 %v570, %v568
    %v717 = vpack.c.b16 %v571, %v569
    %v718 = vpack.c.b16 %v574, %v572
    %v719 = vpack.c.b16 %v575, %v573
    %v720 = vpack.c.b16 %v578, %v576
    %v721 = vpack.c.b16 %v579, %v577
    %v722 = vpack.c.b16 %v582, %v580
    %v723 = vpack.c.b16 %v583, %v581
    %v724 = vpack.c.b16 %v586, %v584
    %v725 = vpack.c.b16 %v587, %v585
    %v726 = vpack.c.b16 %v590, %v588
    %v727 = vpack.c.b16 %v591, %v589
    %v728 = vpack.c.b16 %v594, %v592
    %v729 = vpack.c.b16 %v595, %v593
    %v730 = vpack.c.b16 %v598, %v596
    %v731 = vpack.c.b16 %v599, %v597
    %v732 = vpack.c.b16 %v602, %v600
    %v733 = vpack.c.b16 %v603, %v601
    %v734 = vpack.c.b16 %v606, %v604
    %v735 = vpack.c.b16 %v607, %v605
    %864 = vmatpush.bf16.msra.mxu0 %v622
    %865 = vmatpush.bf16.msra.mxu0 %v620
    %866 = vmatpush.bf16.msra.mxu0 %v618
    %867 = vmatpush.bf16.msra.mxu0 %v616
    %868 = vmatpush.bf16.msra.mxu0 %v614
    %869 = vmatpush.bf16.msra.mxu0 %v612
    %870 = vmatpush.bf16.msra.mxu0 %v610
    %871 = vmatpush.bf16.msra.mxu0 %v608
    %872 = vmatmul.bf16.gmra.mxu0 %v82
    %v873 = vpop.f32.mrf.mxu0
    %v874 = vadd.f32 %v220, %v873
    %v875 = vpop.f32.mrf.mxu0
    %876 = vdwg.mxu0
    %877 = vmatpush.bf16.msra.mxu0 %v638
    %878 = vmatpush.bf16.msra.mxu0 %v636
    %879 = vmatpush.bf16.msra.mxu0 %v634
    %880 = vmatpush.bf16.msra.mxu0 %v632
    %881 = vmatpush.bf16.msra.mxu0 %v630
    %882 = vmatpush.bf16.msra.mxu0 %v628
    %883 = vmatpush.bf16.msra.mxu0 %v626
    %884 = vmatpush.bf16.msra.mxu0 %v624
    %885 = vmatmul.bf16.gmra.mxu0 %v83
    %v886 = vpop.f32.mrf.mxu0
    %v887 = vadd.f32 %v874, %v886
    %v888 = vpop.f32.mrf.mxu0
    %889 = vdwg.mxu0
    %890 = vmatpush.bf16.msra.mxu0 %v654
    %891 = vmatpush.bf16.msra.mxu0 %v652
    %892 = vmatpush.bf16.msra.mxu0 %v650
    %893 = vmatpush.bf16.msra.mxu0 %v648
    %894 = vmatpush.bf16.msra.mxu0 %v646
    %895 = vmatpush.bf16.msra.mxu0 %v644
    %896 = vmatpush.bf16.msra.mxu0 %v642
    %897 = vmatpush.bf16.msra.mxu0 %v640
    %898 = vmatmul.bf16.gmra.mxu0 %v84
    %v899 = vpop.f32.mrf.mxu0
    %v900 = vadd.f32 %v887, %v899
    %v901 = vpop.f32.mrf.mxu0
    %902 = vdwg.mxu0
    %903 = vmatpush.bf16.msra.mxu0 %v670
    %904 = vmatpush.bf16.msra.mxu0 %v668
    %905 = vmatpush.bf16.msra.mxu0 %v666
    %906 = vmatpush.bf16.msra.mxu0 %v664
    %907 = vmatpush.bf16.msra.mxu0 %v662
    %908 = vmatpush.bf16.msra.mxu0 %v660
    %909 = vmatpush.bf16.msra.mxu0 %v658
    %910 = vmatpush.bf16.msra.mxu0 %v656
    %911 = vmatmul.bf16.gmra.mxu0 %v85
    %v912 = vpop.f32.mrf.mxu0
    %v913 = vadd.f32 %v900, %v912
    %v914 = vpop.f32.mrf.mxu0
    %915 = vdwg.mxu0
    %916 = vmatpush.bf16.msra.mxu0 %v686
    %917 = vmatpush.bf16.msra.mxu0 %v684
    %918 = vmatpush.bf16.msra.mxu0 %v682
    %919 = vmatpush.bf16.msra.mxu0 %v680
    %920 = vmatpush.bf16.msra.mxu0 %v678
    %921 = vmatpush.bf16.msra.mxu0 %v676
    %922 = vmatpush.bf16.msra.mxu0 %v674
    %923 = vmatpush.bf16.msra.mxu0 %v672
    %924 = vmatmul.bf16.gmra.mxu0 %v86
    %v925 = vpop.f32.mrf.mxu0
    %v926 = vadd.f32 %v913, %v925
    %v927 = vpop.f32.mrf.mxu0
    %928 = vdwg.mxu0
    %929 = vmatpush.bf16.msra.mxu0 %v702
    %930 = vmatpush.bf16.msra.mxu0 %v700
    %931 = vmatpush.bf16.msra.mxu0 %v698
    %932 = vmatpush.bf16.msra.mxu0 %v696
    %933 = vmatpush.bf16.msra.mxu0 %v694
    %934 = vmatpush.bf16.msra.mxu0 %v692
    %935 = vmatpush.bf16.msra.mxu0 %v690
    %936 = vmatpush.bf16.msra.mxu0 %v688
    %937 = vmatmul.bf16.gmra.mxu0 %v87
    %v938 = vpop.f32.mrf.mxu0
    %v939 = vadd.f32 %v926, %v938
    %v940 = vpop.f32.mrf.mxu0
    %941 = vdwg.mxu0
    %942 = vmatpush.bf16.msra.mxu0 %v718
    %943 = vmatpush.bf16.msra.mxu0 %v716
    %944 = vmatpush.bf16.msra.mxu0 %v714
    %945 = vmatpush.bf16.msra.mxu0 %v712
    %946 = vmatpush.bf16.msra.mxu0 %v710
    %947 = vmatpush.bf16.msra.mxu0 %v708
    %948 = vmatpush.bf16.msra.mxu0 %v706
    %949 = vmatpush.bf16.msra.mxu0 %v704
    %950 = vmatmul.bf16.gmra.mxu0 %v88
    %v951 = vpop.f32.mrf.mxu0
    %v952 = vadd.f32 %v939, %v951
    %v953 = vpop.f32.mrf.mxu0
    %954 = vdwg.mxu0
    %955 = vmatpush.bf16.msra.mxu0 %v734
    %956 = vmatpush.bf16.msra.mxu0 %v732
    %957 = vmatpush.bf16.msra.mxu0 %v730
    %958 = vmatpush.bf16.msra.mxu0 %v728
    %959 = vmatpush.bf16.msra.mxu0 %v726
    %960 = vmatpush.bf16.msra.mxu0 %v724
    %961 = vmatpush.bf16.msra.mxu0 %v722
    %962 = vmatpush.bf16.msra.mxu0 %v720
    %963 = vmatmul.bf16.gmra.mxu0 %v89
    %v964 = vpop.f32.mrf.mxu0
    %v965 = vadd.f32 %v952, %v964
    %v966 = vpop.f32.mrf.mxu0
    %967 = vdwg.mxu0
    %968 = vmatpush.bf16.msra.mxu0 %v623
    %969 = vmatpush.bf16.msra.mxu0 %v621
    %970 = vmatpush.bf16.msra.mxu0 %v619
    %971 = vmatpush.bf16.msra.mxu0 %v617
    %972 = vmatpush.bf16.msra.mxu0 %v615
    %973 = vmatpush.bf16.msra.mxu0 %v613
    %974 = vmatpush.bf16.msra.mxu0 %v611
    %975 = vmatpush.bf16.msra.mxu0 %v609
    %976 = vmatmul.bf16.gmra.mxu0 %v82
    %v977 = vpop.f32.mrf.mxu0
    %v978 = vadd.f32 %v221, %v977
    %v979 = vpop.f32.mrf.mxu0
    %980 = vdwg.mxu0
    %981 = vmatpush.bf16.msra.mxu0 %v639
    %982 = vmatpush.bf16.msra.mxu0 %v637
    %983 = vmatpush.bf16.msra.mxu0 %v635
    %984 = vmatpush.bf16.msra.mxu0 %v633
    %985 = vmatpush.bf16.msra.mxu0 %v631
    %986 = vmatpush.bf16.msra.mxu0 %v629
    %987 = vmatpush.bf16.msra.mxu0 %v627
    %988 = vmatpush.bf16.msra.mxu0 %v625
    %989 = vmatmul.bf16.gmra.mxu0 %v83
    %v990 = vpop.f32.mrf.mxu0
    %v991 = vadd.f32 %v978, %v990
    %v992 = vpop.f32.mrf.mxu0
    %993 = vdwg.mxu0
    %994 = vmatpush.bf16.msra.mxu0 %v655
    %995 = vmatpush.bf16.msra.mxu0 %v653
    %996 = vmatpush.bf16.msra.mxu0 %v651
    %997 = vmatpush.bf16.msra.mxu0 %v649
    %998 = vmatpush.bf16.msra.mxu0 %v647
    %999 = vmatpush.bf16.msra.mxu0 %v645
    %1000 = vmatpush.bf16.msra.mxu0 %v643
    %1001 = vmatpush.bf16.msra.mxu0 %v641
    %1002 = vmatmul.bf16.gmra.mxu0 %v84
    %v1003 = vpop.f32.mrf.mxu0
    %v1004 = vadd.f32 %v991, %v1003
    %v1005 = vpop.f32.mrf.mxu0
    %1006 = vdwg.mxu0
    %1007 = vmatpush.bf16.msra.mxu0 %v671
    %1008 = vmatpush.bf16.msra.mxu0 %v669
    %1009 = vmatpush.bf16.msra.mxu0 %v667
    %1010 = vmatpush.bf16.msra.mxu0 %v665
    %1011 = vmatpush.bf16.msra.mxu0 %v663
    %1012 = vmatpush.bf16.msra.mxu0 %v661
    %1013 = vmatpush.bf16.msra.mxu0 %v659
    %1014 = vmatpush.bf16.msra.mxu0 %v657
    %1015 = vmatmul.bf16.gmra.mxu0 %v85
    %v1016 = vpop.f32.mrf.mxu0
    %v1017 = vadd.f32 %v1004, %v1016
    %v1018 = vpop.f32.mrf.mxu0
    %1019 = vdwg.mxu0
    %1020 = vmatpush.bf16.msra.mxu0 %v687
    %1021 = vmatpush.bf16.msra.mxu0 %v685
    %1022 = vmatpush.bf16.msra.mxu0 %v683
    %1023 = vmatpush.bf16.msra.mxu0 %v681
    %1024 = vmatpush.bf16.msra.mxu0 %v679
    %1025 = vmatpush.bf16.msra.mxu0 %v677
    %1026 = vmatpush.bf16.msra.mxu0 %v675
    %1027 = vmatpush.bf16.msra.mxu0 %v673
    %1028 = vmatmul.bf16.gmra.mxu0 %v86
    %v1029 = vpop.f32.mrf.mxu0
    %v1030 = vadd.f32 %v1017, %v1029
    %v1031 = vpop.f32.mrf.mxu0
    %1032 = vdwg.mxu0
    %1033 = vmatpush.bf16.msra.mxu0 %v703
    %1034 = vmatpush.bf16.msra.mxu0 %v701
    %1035 = vmatpush.bf16.msra.mxu0 %v699
    %1036 = vmatpush.bf16.msra.mxu0 %v697
    %1037 = vmatpush.bf16.msra.mxu0 %v695
    %1038 = vmatpush.bf16.msra.mxu0 %v693
    %1039 = vmatpush.bf16.msra.mxu0 %v691
    %1040 = vmatpush.bf16.msra.mxu0 %v689
    %1041 = vmatmul.bf16.gmra.mxu0 %v87
    %v1042 = vpop.f32.mrf.mxu0
    %v1043 = vadd.f32 %v1030, %v1042
    %v1044 = vpop.f32.mrf.mxu0
    %1045 = vdwg.mxu0
    %1046 = vmatpush.bf16.msra.mxu0 %v719
    %1047 = vmatpush.bf16.msra.mxu0 %v717
    %1048 = vmatpush.bf16.msra.mxu0 %v715
    %1049 = vmatpush.bf16.msra.mxu0 %v713
    %1050 = vmatpush.bf16.msra.mxu0 %v711
    %1051 = vmatpush.bf16.msra.mxu0 %v709
    %1052 = vmatpush.bf16.msra.mxu0 %v707
    %1053 = vmatpush.bf16.msra.mxu0 %v705
    %1054 = vmatmul.bf16.gmra.mxu0 %v88
    %v1055 = vpop.f32.mrf.mxu0
    %v1056 = vadd.f32 %v1043, %v1055
    %v1057 = vpop.f32.mrf.mxu0
    %1058 = vdwg.mxu0
    %1059 = vmatpush.bf16.msra.mxu0 %v735
    %1060 = vmatpush.bf16.msra.mxu0 %v733
    %1061 = vmatpush.bf16.msra.mxu0 %v731
    %1062 = vmatpush.bf16.msra.mxu0 %v729
    %1063 = vmatpush.bf16.msra.mxu0 %v727
    %1064 = vmatpush.bf16.msra.mxu0 %v725
    %1065 = vmatpush.bf16.msra.mxu0 %v723
    %1066 = vmatpush.bf16.msra.mxu0 %v721
    %1067 = vmatmul.bf16.gmra.mxu0 %v89
    %v1068 = vpop.f32.mrf.mxu0
    %v1069 = vadd.f32 %v1056, %v1068
    %v1070 = vpop.f32.mrf.mxu0
    %1071 = vdwg.mxu0
    %v1072 = vmax.f32 %v965, 0.0
    %v1073 = vmax.f32 %v1069, 0.0
    %v1074 = vpack.c.bf16 %v1072, %v1072
    %v1075 = vpack.c.bf16 %v1073, %v1073
    %v1076 = vld [vmem:[#allocation5] sm:$0xf]
    %v1077 = vld [vmem:[#allocation5 + $0x4] sm:$0xf]
    %v1078 = vld [vmem:[#allocation5 + $0x8] sm:$0xf]
    %v1079 = vld [vmem:[#allocation5 + $0xc] sm:$0xf]
    %v1080 = vld [vmem:[#allocation5 + $0x10] sm:$0xf]
    %v1081 = vld [vmem:[#allocation5 + $0x14] sm:$0xf]
    %v1082 = vld [vmem:[#allocation5 + $0x18] sm:$0xf]
    %v1083 = vld [vmem:[#allocation5 + $0x1c] sm:$0xf]
    %v1084 = vld [vmem:[#allocation5 + $0x20] sm:$0xf]
    %v1085 = vld [vmem:[#allocation5 + $0x24] sm:$0xf]
    %v1086 = vld [vmem:[#allocation5 + $0x28] sm:$0xf]
    %v1087 = vld [vmem:[#allocation5 + $0x2c] sm:$0xf]
    %v1088 = vld [vmem:[#allocation5 + $0x30] sm:$0xf]
    %v1089 = vld [vmem:[#allocation5 + $0x34] sm:$0xf]
    %v1090 = vld [vmem:[#allocation5 + $0x38] sm:$0xf]
    %v1091 = vld [vmem:[#allocation5 + $0x3c] sm:$0xf]
    %v1092 = vld [vmem:[#allocation5 + $0x40] sm:$0xf]
    %v1093 = vld [vmem:[#allocation5 + $0x44] sm:$0xf]
    %v1094 = vld [vmem:[#allocation5 + $0x48] sm:$0xf]
    %v1095 = vld [vmem:[#allocation5 + $0x4c] sm:$0xf]
    %v1096 = vld [vmem:[#allocation5 + $0x50] sm:$0xf]
    %v1097 = vld [vmem:[#allocation5 + $0x54] sm:$0xf]
    %v1098 = vld [vmem:[#allocation5 + $0x58] sm:$0xf]
    %v1099 = vld [vmem:[#allocation5 + $0x5c] sm:$0xf]
    %v1100 = vld [vmem:[#allocation5 + $0x60] sm:$0xf]
    %v1101 = vld [vmem:[#allocation5 + $0x64] sm:$0xf]
    %v1102 = vld [vmem:[#allocation5 + $0x68] sm:$0xf]
    %v1103 = vld [vmem:[#allocation5 + $0x6c] sm:$0xf]
    %v1104 = vld [vmem:[#allocation5 + $0x70] sm:$0xf]
    %v1105 = vld [vmem:[#allocation5 + $0x74] sm:$0xf]
    %v1106 = vld [vmem:[#allocation5 + $0x78] sm:$0xf]
    %v1107 = vld [vmem:[#allocation5 + $0x7c] sm:$0xf]
    %v1108 = vld [vmem:[%s4] sm:$0x1]
    %v1110 = vperm.slane %v1108, 0
    %v1144 = vunpack.c.l.b16 %v1076
    %v1145 = vunpack.c.l.b16 %v1077
    %v1146 = vunpack.c.l.b16 %v1078
    %v1147 = vunpack.c.l.b16 %v1079
    %v1148 = vunpack.c.l.b16 %v1080
    %v1149 = vunpack.c.l.b16 %v1081
    %v1150 = vunpack.c.l.b16 %v1082
    %v1151 = vunpack.c.l.b16 %v1083
    %v1152 = vunpack.c.l.b16 %v1084
    %v1153 = vunpack.c.l.b16 %v1085
    %v1154 = vunpack.c.l.b16 %v1086
    %v1155 = vunpack.c.l.b16 %v1087
    %v1156 = vunpack.c.l.b16 %v1088
    %v1157 = vunpack.c.l.b16 %v1089
    %v1158 = vunpack.c.l.b16 %v1090
    %v1159 = vunpack.c.l.b16 %v1091
    %v1160 = vunpack.c.l.b16 %v1092
    %v1161 = vunpack.c.l.b16 %v1093
    %v1162 = vunpack.c.l.b16 %v1094
    %v1163 = vunpack.c.l.b16 %v1095
    %v1164 = vunpack.c.l.b16 %v1096
    %v1165 = vunpack.c.l.b16 %v1097
    %v1166 = vunpack.c.l.b16 %v1098
    %v1167 = vunpack.c.l.b16 %v1099
    %v1168 = vunpack.c.l.b16 %v1100
    %v1169 = vunpack.c.l.b16 %v1101
    %v1170 = vunpack.c.l.b16 %v1102
    %v1171 = vunpack.c.l.b16 %v1103
    %v1172 = vunpack.c.l.b16 %v1104
    %v1173 = vunpack.c.l.b16 %v1105
    %v1174 = vunpack.c.l.b16 %v1106
    %v1175 = vunpack.c.l.b16 %v1107
    %v1176 = vpack.c.b16 %v1145, %v1144
    %v1177 = vpack.c.b16 %v1147, %v1146
    %v1178 = vpack.c.b16 %v1149, %v1148
    %v1179 = vpack.c.b16 %v1151, %v1150
    %v1180 = vpack.c.b16 %v1153, %v1152
    %v1181 = vpack.c.b16 %v1155, %v1154
    %v1182 = vpack.c.b16 %v1157, %v1156
    %v1183 = vpack.c.b16 %v1159, %v1158
    %v1184 = vpack.c.b16 %v1161, %v1160
    %v1185 = vpack.c.b16 %v1163, %v1162
    %v1186 = vpack.c.b16 %v1165, %v1164
    %v1187 = vpack.c.b16 %v1167, %v1166
    %v1188 = vpack.c.b16 %v1169, %v1168
    %v1189 = vpack.c.b16 %v1171, %v1170
    %v1190 = vpack.c.b16 %v1173, %v1172
    %v1191 = vpack.c.b16 %v1175, %v1174
    %1208 = vmatpush.bf16.msra.mxu0 %v1183
    %1209 = vmatpush.bf16.msra.mxu0 %v1182
    %1210 = vmatpush.bf16.msra.mxu0 %v1181
    %1211 = vmatpush.bf16.msra.mxu0 %v1180
    %1212 = vmatpush.bf16.msra.mxu0 %v1179
    %1213 = vmatpush.bf16.msra.mxu0 %v1178
    %1214 = vmatpush.bf16.msra.mxu0 %v1177
    %1215 = vmatpush.bf16.msra.mxu0 %v1176
    %1216 = vmatmul.bf16.gmra.mxu0 %v1074
    %v1217 = vpop.f32.mrf.mxu0
    %v1218 = vadd.f32 %v1110, %v1217
    %v1219 = vpop.f32.mrf.mxu0
    %1220 = vdwg.mxu0
    %1221 = vmatpush.bf16.msra.mxu0 %v1191
    %1222 = vmatpush.bf16.msra.mxu0 %v1190
    %1223 = vmatpush.bf16.msra.mxu0 %v1189
    %1224 = vmatpush.bf16.msra.mxu0 %v1188
    %1225 = vmatpush.bf16.msra.mxu0 %v1187
    %1226 = vmatpush.bf16.msra.mxu0 %v1186
    %1227 = vmatpush.bf16.msra.mxu0 %v1185
    %1228 = vmatpush.bf16.msra.mxu0 %v1184
    %1229 = vmatmul.bf16.gmra.mxu0 %v1075
    %v1230 = vpop.f32.mrf.mxu0
    %v1231 = vadd.f32 %v1218, %v1230
    %v1232 = vpop.f32.mrf.mxu0
    %1233 = vdwg.mxu0
    %v1234 = vmax.f32 %v1231, 0.0
    %v1235 = vpack.c.bf16 %v1234, %v1234
    %v1236 = vld [vmem:[%s5] sm:$0xf]
    %v1237 = vld [vmem:[%s5 + $0x4] sm:$0xf]
    %v1238 = vld [vmem:[%s5 + $0x8] sm:$0xf]
    %v1239 = vld [vmem:[%s5 + $0xc] sm:$0xf]
    %v1240 = vld [vmem:[%s5 + $0x10] sm:$0xf]
    %v1241 = vld [vmem:[%s5 + $0x14] sm:$0xf]
    %v1242 = vld [vmem:[%s5 + $0x18] sm:$0xf]
    %v1243 = vld [vmem:[%s5 + $0x1c] sm:$0xf]
    %v1244 = vld [vmem:[%s5 + $0x20] sm:$0xf]
    %v1245 = vld [vmem:[%s5 + $0x24] sm:$0xf]
    %v1246 = vld [vmem:[%s5 + $0x28] sm:$0xf]
    %v1247 = vld [vmem:[%s5 + $0x2c] sm:$0xf]
    %v1248 = vld [vmem:[%s5 + $0x30] sm:$0xf]
    %v1249 = vld [vmem:[%s5 + $0x34] sm:$0xf]
    %v1250 = vld [vmem:[%s5 + $0x38] sm:$0xf]
    %v1251 = vld [vmem:[%s5 + $0x3c] sm:$0xf]
    %v1252 = vld [vmem:[%s6] sm:$0x1]
    %v1254 = vperm.slane %v1252, 0
    %v1272 = vunpack.c.l.b16 %v1236
    %v1273 = vunpack.c.l.b16 %v1237
    %v1274 = vunpack.c.l.b16 %v1238
    %v1275 = vunpack.c.l.b16 %v1239
    %v1276 = vunpack.c.l.b16 %v1240
    %v1277 = vunpack.c.l.b16 %v1241
    %v1278 = vunpack.c.l.b16 %v1242
    %v1279 = vunpack.c.l.b16 %v1243
    %v1280 = vunpack.c.l.b16 %v1244
    %v1281 = vunpack.c.l.b16 %v1245
    %v1282 = vunpack.c.l.b16 %v1246
    %v1283 = vunpack.c.l.b16 %v1247
    %v1284 = vunpack.c.l.b16 %v1248
    %v1285 = vunpack.c.l.b16 %v1249
    %v1286 = vunpack.c.l.b16 %v1250
    %v1287 = vunpack.c.l.b16 %v1251
    %v1288 = vpack.c.b16 %v1273, %v1272
    %v1289 = vpack.c.b16 %v1275, %v1274
    %v1290 = vpack.c.b16 %v1277, %v1276
    %v1291 = vpack.c.b16 %v1279, %v1278
    %v1292 = vpack.c.b16 %v1281, %v1280
    %v1293 = vpack.c.b16 %v1283, %v1282
    %v1294 = vpack.c.b16 %v1285, %v1284
    %v1295 = vpack.c.b16 %v1287, %v1286
    %1304 = vmatpush.bf16.msra.mxu0 %v1295
    %1305 = vmatpush.bf16.msra.mxu0 %v1294
    %1306 = vmatpush.bf16.msra.mxu0 %v1293
    %1307 = vmatpush.bf16.msra.mxu0 %v1292
    %1308 = vmatpush.bf16.msra.mxu0 %v1291
    %1309 = vmatpush.bf16.msra.mxu0 %v1290
    %1310 = vmatpush.bf16.msra.mxu0 %v1289
    %1311 = vmatpush.bf16.msra.mxu0 %v1288
    %1312 = vmatmul.bf16.gmra.mxu0 %v1235
    %v1313 = vpop.f32.mrf.mxu0
    %v1314 = vadd.f32 %v1254, %v1313
    %v1315 = vpop.f32.mrf.mxu0
    %1316 = vdwg.mxu0
    %vm1317 = vcmask 254976
    %1318 = vst.msk [vmem:[#allocation7] sm:$0x3] %vm1317, %v1314
    // Predicated region
    $region38: #{tpu_custom_call.1} parent=1 // pred_check
      _
    $region39: #{tpu_custom_call.1} parent=1 // pred_check_branch
      %1320 = sbr.rel (0) target = $region41
    $region40: #{tpu_custom_call.1} parent=1 // pred_region
      %1322 = vsyncadd [#allocation4], 0
      %s1324 = sshll.u32 [#allocation7], 4
      %s1325 = int_to_ptr.vmem [resolvable:$true] %s1324
      %s1326 = sshll.u32 %s7, 4
      %s1327 = int_to_ptr.hbm [resolvable:$true] %s1326
      %1329 = dma.vmem_to_hbm [thread:$0]  %s1325, 32, %s1327, [#allocation4]
    $region41: #{tpu_custom_call.1} parent=1 // pred_fallthru
      _
    // Predicated region
    $region42: #{tpu_custom_call.1} parent=1 // pred_check
      _
    $region43: #{tpu_custom_call.1} parent=1 // pred_check_branch
      %1331 = sbr.rel (0) target = $region45
    $region44: #{tpu_custom_call.1} parent=1 // pred_region
      %1333 = dma.done [#allocation4], 32
    $region45: #{tpu_custom_call.1} parent=1 // pred_fallthru
      _
    %1334 = vsyncpa [#allocation3], 1
    %1335 = vsyncpa [#allocation6], 1
    %1336 = vsyncpa [#allocation4], 1

</llo_original>
